<compile_context>
chip_gen: v5e
topology: v5e:2x2
jax: 0.10.0
libtpu: 0.0.40
codegen_flags: <defaults>
</compile_context>

<pallas_src>
import functools

import jax
import jax.numpy as jnp
from jax.experimental import pallas as pl
from jax.experimental.pallas import tpu as pltpu


def _round_up(n, m):
    return ((n + m - 1) // m) * m


def _leaky_relu(x, slope=0.2):
    return jnp.where(x > 0, x, slope * x)


def conv_generator_kernel(x_ref, w1_ref, b1_ref, w2_ref, b2_ref,
                          w3_ref, b3_ref, out_ref):
    """One batch tile of the 3-layer MLP.

    Weights (bf16) are whole-array blocks resident in VMEM across the batch
    grid axis.  MXU matmuls take bf16 operands with f32 accumulation; bias-add
    and LeakyReLU stay in f32 on the VPU (v5e has no bf16 VPU path)."""
    x = x_ref[...].astype(jnp.bfloat16)   # no-op when x already arrives as bf16

    h1 = jnp.dot(x, w1_ref[...],
                 preferred_element_type=jnp.float32) + b1_ref[...]
    h1 = _leaky_relu(h1)

    h2 = jnp.dot(h1.astype(jnp.bfloat16), w2_ref[...],
                 preferred_element_type=jnp.float32) + b2_ref[...]
    h2 = _leaky_relu(h2)

    h3 = jnp.dot(h2.astype(jnp.bfloat16), w3_ref[...],
                 preferred_element_type=jnp.float32) + b3_ref[...]

    out_ref[...] = h3.astype(out_ref.dtype)


_MAX_TB = 512   # rows per batch tile; ~<10 MiB double-buffered footprint, fits
                # comfortably in VMEM on v5e/v6e/v7x.


def _pick_batch_tile(b):
    """Batch-tile size.  Whole batch for tiny b (block dim == array dim is a
    legal block shape); otherwise aim for >= 2 tiles (v7x megacore) of up to
    _MAX_TB rows, multiples of 16 for bf16 sublane packing.  A ragged last
    tile is handled by Pallas' clipped boundary DMAs — no wrapper padding."""
    if b <= 16:
        return b
    return min(_MAX_TB, _round_up((b + 1) // 2, 16))


@functools.partial(jax.jit, static_argnames=("out_dim", "out_dtype"))
def conv_generator_forward(x_nchw, params, out_dim, out_dtype=jnp.float32):
    """x_nchw: (b, C, H, W), f32 or (preferably) bf16.
    Returns (b, 6, out_dim, 1, 1) in `out_dtype` (default float32)."""
    b = x_nchw.shape[0]
    in_dim = x_nchw.shape[1] * x_nchw.shape[2] * x_nchw.shape[3]
    x = x_nchw.reshape(b, in_dim)          # free reshape; keeps input dtype

    w1, b1, w2, b2, w3, b3 = params        # w3/b3 pre-padded at init
    out_feat = out_dim * 6
    out_feat_p = w3.shape[1]               # lane-dense multiple of 128

    tb = _pick_batch_tile(b)
    n_tiles = pl.cdiv(b, tb)

    # Whole-array weight blocks; index_map returns block (0, 0) on every grid
    # step, so weights/biases are DMA'd into VMEM once and reused across tiles.
    w_spec = lambda arr: pl.BlockSpec(arr.shape, lambda i: (0, 0))

    out = pl.pallas_call(
        conv_generator_kernel,
        out_shape=jax.ShapeDtypeStruct((b, out_feat_p), out_dtype),
        grid=(n_tiles,),
        in_specs=[
            pl.BlockSpec((tb, in_dim), lambda i: (i, 0)),
            w_spec(w1), w_spec(b1),
            w_spec(w2), w_spec(b2),
            w_spec(w3), w_spec(b3),
        ],
        out_specs=pl.BlockSpec((tb, out_feat_p), lambda i: (i, 0)),
        compiler_params=pltpu.CompilerParams(
            dimension_semantics=("parallel",)),
    )(x, w1, b1, w2, b2, w3, b3)

    if out_feat_p != out_feat:             # only if out_dim*6 wasn't 128-aligned
        out = out[:, :out_feat]
    return out.reshape(b, 6, out_dim, 1, 1)


def init_params(key, in_dim, out_dim):
    """Deterministic init mimicking nn.Linear default (U[-1/sqrt(fan_in), ...]).
    Weights stored (in_features, out_features) in bf16; biases (1, out) f32.
    The last layer is pre-padded ONCE to a lane-dense multiple of 128 output
    features, so the jitted forward never pads weights per call."""
    out_feat = out_dim * 6
    out_feat_p = _round_up(out_feat, 128)
    dims = [(in_dim, 128, 128), (128, 256, 256), (256, out_feat, out_feat_p)]
    params = []
    for (fan_in, fan_out, fan_out_p) in dims:
        key, kw, kb = jax.random.split(key, 3)
        bound = 1.0 / jnp.sqrt(float(fan_in))
        w = jax.random.uniform(kw, (fan_in, fan_out), jnp.float32, -bound, bound)
        bias = jax.random.uniform(kb, (1, fan_out), jnp.float32, -bound, bound)
        if fan_out_p != fan_out:
            w = jnp.pad(w, ((0, 0), (0, fan_out_p - fan_out)))
            bias = jnp.pad(bias, ((0, 0), (0, fan_out_p - fan_out)))
        params += [w.astype(jnp.bfloat16), bias]
    return tuple(params)


def reference_forward(x_nchw, params, out_dim):
    """Pure-JAX reference: same bf16-rounded operands, f32 HIGHEST-precision
    matmuls, f32 bias/LeakyReLU."""
    b = x_nchw.shape[0]
    x = x_nchw.reshape(b, -1)
    w1, b1, w2, b2, w3, b3 = params
    out_feat = out_dim * 6

    def lin(h, w, bias):
        h_bf = h.astype(jnp.bfloat16).astype(jnp.float32)
        return jnp.dot(h_bf, w.astype(jnp.float32),
                       precision=jax.lax.Precision.HIGHEST) + bias

    h = _leaky_relu(lin(x, w1, b1))
    h = _leaky_relu(lin(h, w2, b2))
    h = lin(h, w3, b3)
    return h[:, :out_feat].reshape(b, 6, out_dim, 1, 1)


if __name__ == "__main__":
    # Small shapes: batch=2, channels=4, spatial=16 -> in_dim = 4*16*16 = 1024
    b, C, H, W = 2, 4, 16, 16
    in_dim = C * H * W
    out_dim = 64

    key = jax.random.PRNGKey(0)
    key, kx = jax.random.split(key)
    # x produced upstream in bf16: the MXU rounds activations to bf16 anyway,
    # and bf16 x halves the dominant HBM stream of this memory-bound kernel.
    x = jax.random.normal(kx, (b, C, H, W), jnp.float32).astype(jnp.bfloat16)

    params = init_params(key, in_dim, out_dim)

    out = conv_generator_forward(x, params, out_dim)
    out = jax.block_until_ready(out)

    ref = reference_forward(x, params, out_dim)
    assert out.shape == (b, 6, out_dim, 1, 1), out.shape
    assert jnp.allclose(out, ref, atol=2e-3, rtol=2e-3), \
        float(jnp.max(jnp.abs(out - ref)))

    print("KERNEL_OK")
</pallas_src>

<mosaic_0001>
module attributes {stable_mosaic.version = 11 : i64} {
  func.func @conv_generator_kernel(%arg0: i32, %arg1: memref<2x1024xbf16, #tpu.memory_space<vmem>>, %arg2: memref<1024x128xbf16, #tpu.memory_space<vmem>>, %arg3: memref<1x128xf32, #tpu.memory_space<vmem>>, %arg4: memref<128x256xbf16, #tpu.memory_space<vmem>>, %arg5: memref<1x256xf32, #tpu.memory_space<vmem>>, %arg6: memref<256x384xbf16, #tpu.memory_space<vmem>>, %arg7: memref<1x384xf32, #tpu.memory_space<vmem>>, %arg8: memref<2x384xf32, #tpu.memory_space<vmem>>) attributes {dimension_semantics = [#tpu.dimension_semantics<parallel>], iteration_bounds = array<i64: 1>, scalar_prefetch = 0 : i64, scratch_operands = 0 : i64, tpu.core_type = #tpu.core_type<tc>, window_params = [{transform_indices = @transform_0, window_bounds = array<i64: 2, 1024>}, {pipeline_mode = #tpu.pipeline_mode<synchronous>, transform_indices = @transform_1, window_bounds = array<i64: 1024, 128>}, {pipeline_mode = #tpu.pipeline_mode<synchronous>, transform_indices = @transform_2, window_bounds = array<i64: 1, 128>}, {pipeline_mode = #tpu.pipeline_mode<synchronous>, transform_indices = @transform_3, window_bounds = array<i64: 128, 256>}, {pipeline_mode = #tpu.pipeline_mode<synchronous>, transform_indices = @transform_4, window_bounds = array<i64: 1, 256>}, {pipeline_mode = #tpu.pipeline_mode<synchronous>, transform_indices = @transform_5, window_bounds = array<i64: 256, 384>}, {pipeline_mode = #tpu.pipeline_mode<synchronous>, transform_indices = @transform_6, window_bounds = array<i64: 1, 384>}, {transform_indices = @transform_7, window_bounds = array<i64: 2, 384>}]} {
    %c0 = arith.constant 0 : index
    %c0_0 = arith.constant 0 : index
    %0 = vector.load %arg1[%c0, %c0_0] : memref<2x1024xbf16, #tpu.memory_space<vmem>>, vector<2x1024xbf16>
    %c0_1 = arith.constant 0 : index
    %c0_2 = arith.constant 0 : index
    %1 = vector.load %arg2[%c0_1, %c0_2] : memref<1024x128xbf16, #tpu.memory_space<vmem>>, vector<1024x128xbf16>
    %cst = arith.constant dense<0.000000e+00> : vector<2x128xf32>
    %2 = tpu.matmul %0, %1, %cst {dimension_numbers = #tpu.dot_dimension_numbers<[1], [0], [0], [1], [0, 0, 1, 1], [], []>} : vector<2x1024xbf16>, vector<1024x128xbf16>, vector<2x128xf32> -> vector<2x128xf32>
    %c0_3 = arith.constant 0 : index
    %c0_4 = arith.constant 0 : index
    %3 = vector.load %arg3[%c0_3, %c0_4] : memref<1x128xf32, #tpu.memory_space<vmem>>, vector<1x128xf32>
    %4 = vector.broadcast %3 : vector<1x128xf32> to vector<2x128xf32>
    %5 = arith.addf %2, %4 : vector<2x128xf32>
    %cst_5 = arith.constant 0.000000e+00 : f32
    %6 = vector.broadcast %cst_5 : f32 to vector<2x128xf32>
    %7 = arith.cmpf ogt, %5, %6 : vector<2x128xf32>
    %cst_6 = arith.constant 2.000000e-01 : f32
    %8 = vector.broadcast %cst_6 : f32 to vector<2x128xf32>
    %9 = arith.mulf %8, %5 : vector<2x128xf32>
    %10 = arith.select %7, %5, %9 : vector<2x128xi1>, vector<2x128xf32>
    %11 = arith.truncf %10 : vector<2x128xf32> to vector<2x128xbf16>
    %c0_7 = arith.constant 0 : index
    %c0_8 = arith.constant 0 : index
    %12 = vector.load %arg4[%c0_7, %c0_8] : memref<128x256xbf16, #tpu.memory_space<vmem>>, vector<128x256xbf16>
    %cst_9 = arith.constant dense<0.000000e+00> : vector<2x256xf32>
    %13 = tpu.matmul %11, %12, %cst_9 {dimension_numbers = #tpu.dot_dimension_numbers<[1], [0], [0], [1], [0, 0, 1, 1], [], []>} : vector<2x128xbf16>, vector<128x256xbf16>, vector<2x256xf32> -> vector<2x256xf32>
    %c0_10 = arith.constant 0 : index
    %c0_11 = arith.constant 0 : index
    %14 = vector.load %arg5[%c0_10, %c0_11] : memref<1x256xf32, #tpu.memory_space<vmem>>, vector<1x256xf32>
    %15 = vector.broadcast %14 : vector<1x256xf32> to vector<2x256xf32>
    %16 = arith.addf %13, %15 : vector<2x256xf32>
    %cst_12 = arith.constant 0.000000e+00 : f32
    %17 = vector.broadcast %cst_12 : f32 to vector<2x256xf32>
    %18 = arith.cmpf ogt, %16, %17 : vector<2x256xf32>
    %cst_13 = arith.constant 2.000000e-01 : f32
    %19 = vector.broadcast %cst_13 : f32 to vector<2x256xf32>
    %20 = arith.mulf %19, %16 : vector<2x256xf32>
    %21 = arith.select %18, %16, %20 : vector<2x256xi1>, vector<2x256xf32>
    %22 = arith.truncf %21 : vector<2x256xf32> to vector<2x256xbf16>
    %c0_14 = arith.constant 0 : index
    %c0_15 = arith.constant 0 : index
    %23 = vector.load %arg6[%c0_14, %c0_15] : memref<256x384xbf16, #tpu.memory_space<vmem>>, vector<256x384xbf16>
    %cst_16 = arith.constant dense<0.000000e+00> : vector<2x384xf32>
    %24 = tpu.matmul %22, %23, %cst_16 {dimension_numbers = #tpu.dot_dimension_numbers<[1], [0], [0], [1], [0, 0, 1, 1], [], []>} : vector<2x256xbf16>, vector<256x384xbf16>, vector<2x384xf32> -> vector<2x384xf32>
    %c0_17 = arith.constant 0 : index
    %c0_18 = arith.constant 0 : index
    %25 = vector.load %arg7[%c0_17, %c0_18] : memref<1x384xf32, #tpu.memory_space<vmem>>, vector<1x384xf32>
    %26 = vector.broadcast %25 : vector<1x384xf32> to vector<2x384xf32>
    %27 = arith.addf %24, %26 : vector<2x384xf32>
    %c0_19 = arith.constant 0 : index
    %c0_20 = arith.constant 0 : index
    %28 = vector.load %arg8[%c0_19, %c0_20] : memref<2x384xf32, #tpu.memory_space<vmem>>, vector<2x384xf32>
    tpu.vector_store %arg8[%c0_19, %c0_20], %27 {strides = array<i32>} : memref<2x384xf32, #tpu.memory_space<vmem>>, vector<2x384xf32>,
    return
  }
  func.func @transform_0(%arg0: i32) -> (i32, i32) {
    %c0_i32 = arith.constant 0 : i32
    %c0_i32_0 = arith.constant 0 : i32
    return %arg0, %c0_i32 : i32, i32
  }
  func.func @transform_1(%arg0: i32) -> (i32, i32) {
    %c0_i32 = arith.constant 0 : i32
    %c0_i32_0 = arith.constant 0 : i32
    %c0_i32_1 = arith.constant 0 : i32
    return %c0_i32, %c0_i32_0 : i32, i32
  }
  func.func @transform_2(%arg0: i32) -> (i32, i32) {
    %c0_i32 = arith.constant 0 : i32
    %c0_i32_0 = arith.constant 0 : i32
    %c0_i32_1 = arith.constant 0 : i32
    return %c0_i32, %c0_i32_0 : i32, i32
  }
  func.func @transform_3(%arg0: i32) -> (i32, i32) {
    %c0_i32 = arith.constant 0 : i32
    %c0_i32_0 = arith.constant 0 : i32
    %c0_i32_1 = arith.constant 0 : i32
    return %c0_i32, %c0_i32_0 : i32, i32
  }
  func.func @transform_4(%arg0: i32) -> (i32, i32) {
    %c0_i32 = arith.constant 0 : i32
    %c0_i32_0 = arith.constant 0 : i32
    %c0_i32_1 = arith.constant 0 : i32
    return %c0_i32, %c0_i32_0 : i32, i32
  }
  func.func @transform_5(%arg0: i32) -> (i32, i32) {
    %c0_i32 = arith.constant 0 : i32
    %c0_i32_0 = arith.constant 0 : i32
    %c0_i32_1 = arith.constant 0 : i32
    return %c0_i32, %c0_i32_0 : i32, i32
  }
  func.func @transform_6(%arg0: i32) -> (i32, i32) {
    %c0_i32 = arith.constant 0 : i32
    %c0_i32_0 = arith.constant 0 : i32
    %c0_i32_1 = arith.constant 0 : i32
    return %c0_i32, %c0_i32_0 : i32, i32
  }
  func.func @transform_7(%arg0: i32) -> (i32, i32) {
    %c0_i32 = arith.constant 0 : i32
    %c0_i32_0 = arith.constant 0 : i32
    return %arg0, %c0_i32 : i32, i32
  }
}

</mosaic_0001>

<llo_original>
// kernel: conv_generator_forward.1
$region0: #{conv_generator_forward.1}
  #allocation0 [shape = 'u32[]', space=smem, size = 0x4, offset = 0x4, fixed_abs, tag = 'smem constant byte address 0x4 - core index']
  #allocation1 [shape = 'u32[72,128]{1,0:T(1,128)}', space=vmem, size = 0x9000, scoped, tag = 'internal scratch']
  %s0 = inlined_call_operand.vmem [shape: bf16[2,1024], index: 0, kind: input, shape index: {}]
  %s1 = inlined_call_operand.hbm [shape: bf16[1024,128], index: 1, kind: input, shape index: {}]
  %s2 = inlined_call_operand.vmem [shape: f32[1,128], index: 2, kind: input, shape index: {}]
  %s3 = inlined_call_operand.hbm [shape: bf16[128,256], index: 3, kind: input, shape index: {}]
  %s4 = inlined_call_operand.vmem [shape: f32[1,256], index: 4, kind: input, shape index: {}]
  %s5 = inlined_call_operand.hbm [shape: bf16[256,384], index: 5, kind: input, shape index: {}]
  %s6 = inlined_call_operand.vmem [shape: f32[1,384], index: 6, kind: input, shape index: {}]
  %s7 = inlined_call_operand.vmem [shape: f32[2,384], index: 7, kind: output, shape index: {}]
  %s8 = sld [smem:[#allocation0]]
  $region50: #{conv_generator_forward.1} parent=0
    _
  %s10 = ssub.s32 1, %s8
  %s11 = scalar_select 0, %s10, %s8
  $region1: #{conv_generator_forward.1} parent=0
    #allocation2 [shape = 'u8[262144]{0}', space=vmem, size = 0x40000, scoped, tag = 'input window, operand 1, single buffered']
    #allocation3 [shape = 's32[1]{0}', space=sflag, size = 0x4, scoped, tag = 'scoped memory for conv_generator_forward.1']
    #allocation4 [shape = 'u8[65536]{0}', space=vmem, size = 0x10000, scoped, tag = 'input window, operand 3, single buffered']
    #allocation5 [shape = 's32[1]{0}', space=sflag, size = 0x4, scoped, tag = 'scoped memory for conv_generator_forward.1']
    #allocation6 [shape = 'u8[196608]{0}', space=vmem, size = 0x30000, scoped, tag = 'input window, operand 5, single buffered']
    %12 = vsyncpa [#allocation3], 0
    %13 = vsyncpa [#allocation5], 0
    // Predicated region
    $region2: #{conv_generator_forward.1} parent=1 // pred_check
      _
    $region3: #{conv_generator_forward.1} parent=1 // pred_check_branch
      %15 = sbr.rel (0) target = $region5
    $region4: #{conv_generator_forward.1} parent=1 // pred_region
      _
    $region5: #{conv_generator_forward.1} parent=1 // pred_fallthru
      _
    // Predicated region
    $region6: #{conv_generator_forward.1} parent=1 // pred_check
      _
    $region7: #{conv_generator_forward.1} parent=1 // pred_check_branch
      %17 = sbr.rel (0) target = $region9
    $region8: #{conv_generator_forward.1} parent=1 // pred_region
      %19 = vsyncadd [#allocation3], 0
      %s20 = sshll.u32 %s1, 4
      %s21 = int_to_ptr.hbm [resolvable:$true] %s20
      %s22 = sshll.u32 [#allocation2], 4
      %s23 = int_to_ptr.vmem [resolvable:$true] %s22
      %28 = dma.hbm_to_vmem [thread:$0]  %s21, 8192, %s23, [#allocation3], 64, 64, 4
    $region9: #{conv_generator_forward.1} parent=1 // pred_fallthru
      _
    // Predicated region
    $region10: #{conv_generator_forward.1} parent=1 // pred_check
      _
    $region11: #{conv_generator_forward.1} parent=1 // pred_check_branch
      %30 = sbr.rel (0) target = $region13
    $region12: #{conv_generator_forward.1} parent=1 // pred_region
      _
    $region13: #{conv_generator_forward.1} parent=1 // pred_fallthru
      _
    // Predicated region
    $region14: #{conv_generator_forward.1} parent=1 // pred_check
      _
    $region15: #{conv_generator_forward.1} parent=1 // pred_check_branch
      %32 = sbr.rel (0) target = $region17
    $region16: #{conv_generator_forward.1} parent=1 // pred_region
      %34 = vsyncadd [#allocation5], 0
      %s35 = sshll.u32 %s3, 4
      %s36 = int_to_ptr.hbm [resolvable:$true] %s35
      %s37 = sshll.u32 [#allocation4], 4
      %s38 = int_to_ptr.vmem [resolvable:$true] %s37
      %43 = dma.hbm_to_vmem [thread:$0]  %s36, 2048, %s38, [#allocation5], 128, 128, 8
    $region17: #{conv_generator_forward.1} parent=1 // pred_fallthru
      _
    // Predicated region
    $region18: #{conv_generator_forward.1} parent=1 // pred_check
      _
    $region19: #{conv_generator_forward.1} parent=1 // pred_check_branch
      %45 = sbr.rel (0) target = $region21
    $region20: #{conv_generator_forward.1} parent=1 // pred_region
      _
    $region21: #{conv_generator_forward.1} parent=1 // pred_fallthru
      _
    // Predicated region
    $region22: #{conv_generator_forward.1} parent=1 // pred_check
      _
    $region23: #{conv_generator_forward.1} parent=1 // pred_check_branch
      %47 = sbr.rel (0) target = $region25
    $region24: #{conv_generator_forward.1} parent=1 // pred_region
      %49 = vsyncadd [#allocation5], 0
      %s50 = sshll.u32 %s5, 4
      %s51 = int_to_ptr.hbm [resolvable:$true] %s50
      %s52 = sshll.u32 [#allocation6], 4
      %s53 = int_to_ptr.vmem [resolvable:$true] %s52
      %58 = dma.hbm_to_vmem [thread:$0]  %s51, 6144, %s53, [#allocation5], 192, 192, 12
    $region25: #{conv_generator_forward.1} parent=1 // pred_fallthru
      _
    // Predicated region
    $region26: #{conv_generator_forward.1} parent=1 // pred_check
      _
    $region27: #{conv_generator_forward.1} parent=1 // pred_check_branch
      %60 = sbr.rel (0) target = $region29
    $region28: #{conv_generator_forward.1} parent=1 // pred_region
      _
    $region29: #{conv_generator_forward.1} parent=1 // pred_fallthru
      _
    // Predicated region
    $region30: #{conv_generator_forward.1} parent=1 // pred_check
      _
    $region31: #{conv_generator_forward.1} parent=1 // pred_check_branch
      %62 = sbr.rel (0) target = $region33
    $region32: #{conv_generator_forward.1} parent=1 // pred_region
      %64 = dma.done [#allocation3], 8192
    $region33: #{conv_generator_forward.1} parent=1 // pred_fallthru
      _
    // Predicated region
    $region34: #{conv_generator_forward.1} parent=1 // pred_check
      _
    $region35: #{conv_generator_forward.1} parent=1 // pred_check_branch
      %66 = sbr.rel (0) target = $region37
    $region36: #{conv_generator_forward.1} parent=1 // pred_region
      %68 = dma.done [#allocation5], 2048
    $region37: #{conv_generator_forward.1} parent=1 // pred_fallthru
      _
    // Predicated region
    $region38: #{conv_generator_forward.1} parent=1 // pred_check
      _
    $region39: #{conv_generator_forward.1} parent=1 // pred_check_branch
      %70 = sbr.rel (0) target = $region41
    $region40: #{conv_generator_forward.1} parent=1 // pred_region
      %72 = dma.done [#allocation5], 6144
    $region41: #{conv_generator_forward.1} parent=1 // pred_fallthru
      _
    %v73 = vld [vmem:[%s0] sm:$0xff]
    %v74 = vld [vmem:[#allocation2] sm:$0xf]
    %v75 = vld [vmem:[#allocation2 + $0x4] sm:$0xf]
    %v76 = vld [vmem:[#allocation2 + $0x8] sm:$0xf]
    %v77 = vld [vmem:[#allocation2 + $0xc] sm:$0xf]
    %v78 = vld [vmem:[#allocation2 + $0x10] sm:$0xf]
    %v79 = vld [vmem:[#allocation2 + $0x14] sm:$0xf]
    %v80 = vld [vmem:[#allocation2 + $0x18] sm:$0xf]
    %v81 = vld [vmem:[#allocation2 + $0x1c] sm:$0xf]
    %v82 = vld [vmem:[#allocation2 + $0x20] sm:$0xf]
    %v83 = vld [vmem:[#allocation2 + $0x24] sm:$0xf]
    %v84 = vld [vmem:[#allocation2 + $0x28] sm:$0xf]
    %v85 = vld [vmem:[#allocation2 + $0x2c] sm:$0xf]
    %v86 = vld [vmem:[#allocation2 + $0x30] sm:$0xf]
    %v87 = vld [vmem:[#allocation2 + $0x34] sm:$0xf]
    %v88 = vld [vmem:[#allocation2 + $0x38] sm:$0xf]
    %v89 = vld [vmem:[#allocation2 + $0x3c] sm:$0xf]
    %v90 = vld [vmem:[#allocation2 + $0x40] sm:$0xf]
    %v91 = vld [vmem:[#allocation2 + $0x44] sm:$0xf]
    %v92 = vld [vmem:[#allocation2 + $0x48] sm:$0xf]
    %v93 = vld [vmem:[#allocation2 + $0x4c] sm:$0xf]
    %v94 = vld [vmem:[#allocation2 + $0x50] sm:$0xf]
    %v95 = vld [vmem:[#allocation2 + $0x54] sm:$0xf]
    %v96 = vld [vmem:[#allocation2 + $0x58] sm:$0xf]
    %v97 = vld [vmem:[#allocation2 + $0x5c] sm:$0xf]
    %v98 = vld [vmem:[#allocation2 + $0x60] sm:$0xf]
    %v99 = vld [vmem:[#allocation2 + $0x64] sm:$0xf]
    %v100 = vld [vmem:[#allocation2 + $0x68] sm:$0xf]
    %v101 = vld [vmem:[#allocation2 + $0x6c] sm:$0xf]
    %v102 = vld [vmem:[#allocation2 + $0x70] sm:$0xf]
    %v103 = vld [vmem:[#allocation2 + $0x74] sm:$0xf]
    %v104 = vld [vmem:[#allocation2 + $0x78] sm:$0xf]
    %v105 = vld [vmem:[#allocation2 + $0x7c] sm:$0xf]
    %v106 = vld [vmem:[#allocation2 + $0x80] sm:$0xf]
    %v107 = vld [vmem:[#allocation2 + $0x84] sm:$0xf]
    %v108 = vld [vmem:[#allocation2 + $0x88] sm:$0xf]
    %v109 = vld [vmem:[#allocation2 + $0x8c] sm:$0xf]
    %v110 = vld [vmem:[#allocation2 + $0x90] sm:$0xf]
    %v111 = vld [vmem:[#allocation2 + $0x94] sm:$0xf]
    %v112 = vld [vmem:[#allocation2 + $0x98] sm:$0xf]
    %v113 = vld [vmem:[#allocation2 + $0x9c] sm:$0xf]
    %v114 = vld [vmem:[#allocation2 + $0xa0] sm:$0xf]
    %v115 = vld [vmem:[#allocation2 + $0xa4] sm:$0xf]
    %v116 = vld [vmem:[#allocation2 + $0xa8] sm:$0xf]
    %v117 = vld [vmem:[#allocation2 + $0xac] sm:$0xf]
    %v118 = vld [vmem:[#allocation2 + $0xb0] sm:$0xf]
    %v119 = vld [vmem:[#allocation2 + $0xb4] sm:$0xf]
    %v120 = vld [vmem:[#allocation2 + $0xb8] sm:$0xf]
    %v121 = vld [vmem:[#allocation2 + $0xbc] sm:$0xf]
    %v122 = vld [vmem:[#allocation2 + $0xc0] sm:$0xf]
    %v123 = vld [vmem:[#allocation2 + $0xc4] sm:$0xf]
    %v124 = vld [vmem:[#allocation2 + $0xc8] sm:$0xf]
    %v125 = vld [vmem:[#allocation2 + $0xcc] sm:$0xf]
    %v126 = vld [vmem:[#allocation2 + $0xd0] sm:$0xf]
    %v127 = vld [vmem:[#allocation2 + $0xd4] sm:$0xf]
    %v128 = vld [vmem:[#allocation2 + $0xd8] sm:$0xf]
    %v129 = vld [vmem:[#allocation2 + $0xdc] sm:$0xf]
    %v130 = vld [vmem:[#allocation2 + $0xe0] sm:$0xf]
    %v131 = vld [vmem:[#allocation2 + $0xe4] sm:$0xf]
    %v132 = vld [vmem:[#allocation2 + $0xe8] sm:$0xf]
    %v133 = vld [vmem:[#allocation2 + $0xec] sm:$0xf]
    %v134 = vld [vmem:[#allocation2 + $0xf0] sm:$0xf]
    %v135 = vld [vmem:[#allocation2 + $0xf4] sm:$0xf]
    %v136 = vld [vmem:[#allocation2 + $0xf8] sm:$0xf]
    %v137 = vld [vmem:[#allocation2 + $0xfc] sm:$0xf]
    %v138 = vld [vmem:[#allocation2 + $0x100] sm:$0xf]
    %v139 = vld [vmem:[#allocation2 + $0x104] sm:$0xf]
    %v140 = vld [vmem:[#allocation2 + $0x108] sm:$0xf]
    %v141 = vld [vmem:[#allocation2 + $0x10c] sm:$0xf]
    %v142 = vld [vmem:[#allocation2 + $0x110] sm:$0xf]
    %v143 = vld [vmem:[#allocation2 + $0x114] sm:$0xf]
    %v144 = vld [vmem:[#allocation2 + $0x118] sm:$0xf]
    %v145 = vld [vmem:[#allocation2 + $0x11c] sm:$0xf]
    %v146 = vld [vmem:[#allocation2 + $0x120] sm:$0xf]
    %v147 = vld [vmem:[#allocation2 + $0x124] sm:$0xf]
    %v148 = vld [vmem:[#allocation2 + $0x128] sm:$0xf]
    %v149 = vld [vmem:[#allocation2 + $0x12c] sm:$0xf]
    %v150 = vld [vmem:[#allocation2 + $0x130] sm:$0xf]
    %v151 = vld [vmem:[#allocation2 + $0x134] sm:$0xf]
    %v152 = vld [vmem:[#allocation2 + $0x138] sm:$0xf]
    %v153 = vld [vmem:[#allocation2 + $0x13c] sm:$0xf]
    %v154 = vld [vmem:[#allocation2 + $0x140] sm:$0xf]
    %v155 = vld [vmem:[#allocation2 + $0x144] sm:$0xf]
    %v156 = vld [vmem:[#allocation2 + $0x148] sm:$0xf]
    %v157 = vld [vmem:[#allocation2 + $0x14c] sm:$0xf]
    %v158 = vld [vmem:[#allocation2 + $0x150] sm:$0xf]
    %v159 = vld [vmem:[#allocation2 + $0x154] sm:$0xf]
    %v160 = vld [vmem:[#allocation2 + $0x158] sm:$0xf]
    %v161 = vld [vmem:[#allocation2 + $0x15c] sm:$0xf]
    %v162 = vld [vmem:[#allocation2 + $0x160] sm:$0xf]
    %v163 = vld [vmem:[#allocation2 + $0x164] sm:$0xf]
    %v164 = vld [vmem:[#allocation2 + $0x168] sm:$0xf]
    %v165 = vld [vmem:[#allocation2 + $0x16c] sm:$0xf]
    %v166 = vld [vmem:[#allocation2 + $0x170] sm:$0xf]
    %v167 = vld [vmem:[#allocation2 + $0x174] sm:$0xf]
    %v168 = vld [vmem:[#allocation2 + $0x178] sm:$0xf]
    %v169 = vld [vmem:[#allocation2 + $0x17c] sm:$0xf]
    %v170 = vld [vmem:[#allocation2 + $0x180] sm:$0xf]
    %v171 = vld [vmem:[#allocation2 + $0x184] sm:$0xf]
    %v172 = vld [vmem:[#allocation2 + $0x188] sm:$0xf]
    %v173 = vld [vmem:[#allocation2 + $0x18c] sm:$0xf]
    %v174 = vld [vmem:[#allocation2 + $0x190] sm:$0xf]
    %v175 = vld [vmem:[#allocation2 + $0x194] sm:$0xf]
    %v176 = vld [vmem:[#allocation2 + $0x198] sm:$0xf]
    %v177 = vld [vmem:[#allocation2 + $0x19c] sm:$0xf]
    %v178 = vld [vmem:[#allocation2 + $0x1a0] sm:$0xf]
    %v179 = vld [vmem:[#allocation2 + $0x1a4] sm:$0xf]
    %v180 = vld [vmem:[#allocation2 + $0x1a8] sm:$0xf]
    %v181 = vld [vmem:[#allocation2 + $0x1ac] sm:$0xf]
    %v182 = vld [vmem:[#allocation2 + $0x1b0] sm:$0xf]
    %v183 = vld [vmem:[#allocation2 + $0x1b4] sm:$0xf]
    %v184 = vld [vmem:[#allocation2 + $0x1b8] sm:$0xf]
    %v185 = vld [vmem:[#allocation2 + $0x1bc] sm:$0xf]
    %v186 = vld [vmem:[#allocation2 + $0x1c0] sm:$0xf]
    %v187 = vld [vmem:[#allocation2 + $0x1c4] sm:$0xf]
    %v188 = vld [vmem:[#allocation2 + $0x1c8] sm:$0xf]
    %v189 = vld [vmem:[#allocation2 + $0x1cc] sm:$0xf]
    %v190 = vld [vmem:[#allocation2 + $0x1d0] sm:$0xf]
    %v191 = vld [vmem:[#allocation2 + $0x1d4] sm:$0xf]
    %v192 = vld [vmem:[#allocation2 + $0x1d8] sm:$0xf]
    %v193 = vld [vmem:[#allocation2 + $0x1dc] sm:$0xf]
    %v194 = vld [vmem:[#allocation2 + $0x1e0] sm:$0xf]
    %v195 = vld [vmem:[#allocation2 + $0x1e4] sm:$0xf]
    %v196 = vld [vmem:[#allocation2 + $0x1e8] sm:$0xf]
    %v197 = vld [vmem:[#allocation2 + $0x1ec] sm:$0xf]
    %v198 = vld [vmem:[#allocation2 + $0x1f0] sm:$0xf]
    %v199 = vld [vmem:[#allocation2 + $0x1f4] sm:$0xf]
    %v200 = vld [vmem:[#allocation2 + $0x1f8] sm:$0xf]
    %v201 = vld [vmem:[#allocation2 + $0x1fc] sm:$0xf]
    %v202 = vld [vmem:[%s2] sm:$0x1]
    %v204 = vperm.slane %v202, 0
    %207 = vst [vmem:[#allocation1] ss:$9 sm:$0xff] %v73
    %v208 = vld [vmem:[#allocation1] sm:$0xff]
    %v209 = vld [vmem:[#allocation1 + $0x9] sm:$0xff]
    %v210 = vld [vmem:[#allocation1 + $0x12] sm:$0xff]
    %v211 = vld [vmem:[#allocation1 + $0x1b] sm:$0xff]
    %v212 = vld [vmem:[#allocation1 + $0x24] sm:$0xff]
    %v213 = vld [vmem:[#allocation1 + $0x2d] sm:$0xff]
    %v214 = vld [vmem:[#allocation1 + $0x36] sm:$0xff]
    %v215 = vld [vmem:[#allocation1 + $0x3f] sm:$0xff]
    %v352 = vunpack.c.l.b16 %v74
    %v353 = vunpack.c.l.b16 %v75
    %v354 = vunpack.c.l.b16 %v76
    %v355 = vunpack.c.l.b16 %v77
    %v356 = vunpack.c.l.b16 %v78
    %v357 = vunpack.c.l.b16 %v79
    %v358 = vunpack.c.l.b16 %v80
    %v359 = vunpack.c.l.b16 %v81
    %v360 = vunpack.c.l.b16 %v82
    %v361 = vunpack.c.l.b16 %v83
    %v362 = vunpack.c.l.b16 %v84
    %v363 = vunpack.c.l.b16 %v85
    %v364 = vunpack.c.l.b16 %v86
    %v365 = vunpack.c.l.b16 %v87
    %v366 = vunpack.c.l.b16 %v88
    %v367 = vunpack.c.l.b16 %v89
    %v368 = vunpack.c.l.b16 %v90
    %v369 = vunpack.c.l.b16 %v91
    %v370 = vunpack.c.l.b16 %v92
    %v371 = vunpack.c.l.b16 %v93
    %v372 = vunpack.c.l.b16 %v94
    %v373 = vunpack.c.l.b16 %v95
    %v374 = vunpack.c.l.b16 %v96
    %v375 = vunpack.c.l.b16 %v97
    %v376 = vunpack.c.l.b16 %v98
    %v377 = vunpack.c.l.b16 %v99
    %v378 = vunpack.c.l.b16 %v100
    %v379 = vunpack.c.l.b16 %v101
    %v380 = vunpack.c.l.b16 %v102
    %v381 = vunpack.c.l.b16 %v103
    %v382 = vunpack.c.l.b16 %v104
    %v383 = vunpack.c.l.b16 %v105
    %v384 = vunpack.c.l.b16 %v106
    %v385 = vunpack.c.l.b16 %v107
    %v386 = vunpack.c.l.b16 %v108
    %v387 = vunpack.c.l.b16 %v109
    %v388 = vunpack.c.l.b16 %v110
    %v389 = vunpack.c.l.b16 %v111
    %v390 = vunpack.c.l.b16 %v112
    %v391 = vunpack.c.l.b16 %v113
    %v392 = vunpack.c.l.b16 %v114
    %v393 = vunpack.c.l.b16 %v115
    %v394 = vunpack.c.l.b16 %v116
    %v395 = vunpack.c.l.b16 %v117
    %v396 = vunpack.c.l.b16 %v118
    %v397 = vunpack.c.l.b16 %v119
    %v398 = vunpack.c.l.b16 %v120
    %v399 = vunpack.c.l.b16 %v121
    %v400 = vunpack.c.l.b16 %v122
    %v401 = vunpack.c.l.b16 %v123
    %v402 = vunpack.c.l.b16 %v124
    %v403 = vunpack.c.l.b16 %v125
    %v404 = vunpack.c.l.b16 %v126
    %v405 = vunpack.c.l.b16 %v127
    %v406 = vunpack.c.l.b16 %v128
    %v407 = vunpack.c.l.b16 %v129
    %v408 = vunpack.c.l.b16 %v130
    %v409 = vunpack.c.l.b16 %v131
    %v410 = vunpack.c.l.b16 %v132
    %v411 = vunpack.c.l.b16 %v133
    %v412 = vunpack.c.l.b16 %v134
    %v413 = vunpack.c.l.b16 %v135
    %v414 = vunpack.c.l.b16 %v136
    %v415 = vunpack.c.l.b16 %v137
    %v416 = vunpack.c.l.b16 %v138
    %v417 = vunpack.c.l.b16 %v139
    %v418 = vunpack.c.l.b16 %v140
    %v419 = vunpack.c.l.b16 %v141
    %v420 = vunpack.c.l.b16 %v142
    %v421 = vunpack.c.l.b16 %v143
    %v422 = vunpack.c.l.b16 %v144
    %v423 = vunpack.c.l.b16 %v145
    %v424 = vunpack.c.l.b16 %v146
    %v425 = vunpack.c.l.b16 %v147
    %v426 = vunpack.c.l.b16 %v148
    %v427 = vunpack.c.l.b16 %v149
    %v428 = vunpack.c.l.b16 %v150
    %v429 = vunpack.c.l.b16 %v151
    %v430 = vunpack.c.l.b16 %v152
    %v431 = vunpack.c.l.b16 %v153
    %v432 = vunpack.c.l.b16 %v154
    %v433 = vunpack.c.l.b16 %v155
    %v434 = vunpack.c.l.b16 %v156
    %v435 = vunpack.c.l.b16 %v157
    %v436 = vunpack.c.l.b16 %v158
    %v437 = vunpack.c.l.b16 %v159
    %v438 = vunpack.c.l.b16 %v160
    %v439 = vunpack.c.l.b16 %v161
    %v440 = vunpack.c.l.b16 %v162
    %v441 = vunpack.c.l.b16 %v163
    %v442 = vunpack.c.l.b16 %v164
    %v443 = vunpack.c.l.b16 %v165
    %v444 = vunpack.c.l.b16 %v166
    %v445 = vunpack.c.l.b16 %v167
    %v446 = vunpack.c.l.b16 %v168
    %v447 = vunpack.c.l.b16 %v169
    %v448 = vunpack.c.l.b16 %v170
    %v449 = vunpack.c.l.b16 %v171
    %v450 = vunpack.c.l.b16 %v172
    %v451 = vunpack.c.l.b16 %v173
    %v452 = vunpack.c.l.b16 %v174
    %v453 = vunpack.c.l.b16 %v175
    %v454 = vunpack.c.l.b16 %v176
    %v455 = vunpack.c.l.b16 %v177
    %v456 = vunpack.c.l.b16 %v178
    %v457 = vunpack.c.l.b16 %v179
    %v458 = vunpack.c.l.b16 %v180
    %v459 = vunpack.c.l.b16 %v181
    %v460 = vunpack.c.l.b16 %v182
    %v461 = vunpack.c.l.b16 %v183
    %v462 = vunpack.c.l.b16 %v184
    %v463 = vunpack.c.l.b16 %v185
    %v464 = vunpack.c.l.b16 %v186
    %v465 = vunpack.c.l.b16 %v187
    %v466 = vunpack.c.l.b16 %v188
    %v467 = vunpack.c.l.b16 %v189
    %v468 = vunpack.c.l.b16 %v190
    %v469 = vunpack.c.l.b16 %v191
    %v470 = vunpack.c.l.b16 %v192
    %v471 = vunpack.c.l.b16 %v193
    %v472 = vunpack.c.l.b16 %v194
    %v473 = vunpack.c.l.b16 %v195
    %v474 = vunpack.c.l.b16 %v196
    %v475 = vunpack.c.l.b16 %v197
    %v476 = vunpack.c.l.b16 %v198
    %v477 = vunpack.c.l.b16 %v199
    %v478 = vunpack.c.l.b16 %v200
    %v479 = vunpack.c.l.b16 %v201
    %v480 = vpack.c.b16 %v353, %v352
    %v481 = vpack.c.b16 %v355, %v354
    %v482 = vpack.c.b16 %v357, %v356
    %v483 = vpack.c.b16 %v359, %v358
    %v484 = vpack.c.b16 %v361, %v360
    %v485 = vpack.c.b16 %v363, %v362
    %v486 = vpack.c.b16 %v365, %v364
    %v487 = vpack.c.b16 %v367, %v366
    %v488 = vpack.c.b16 %v369, %v368
    %v489 = vpack.c.b16 %v371, %v370
    %v490 = vpack.c.b16 %v373, %v372
    %v491 = vpack.c.b16 %v375, %v374
    %v492 = vpack.c.b16 %v377, %v376
    %v493 = vpack.c.b16 %v379, %v378
    %v494 = vpack.c.b16 %v381, %v380
    %v495 = vpack.c.b16 %v383, %v382
    %v496 = vpack.c.b16 %v385, %v384
    %v497 = vpack.c.b16 %v387, %v386
    %v498 = vpack.c.b16 %v389, %v388
    %v499 = vpack.c.b16 %v391, %v390
    %v500 = vpack.c.b16 %v393, %v392
    %v501 = vpack.c.b16 %v395, %v394
    %v502 = vpack.c.b16 %v397, %v396
    %v503 = vpack.c.b16 %v399, %v398
    %v504 = vpack.c.b16 %v401, %v400
    %v505 = vpack.c.b16 %v403, %v402
    %v506 = vpack.c.b16 %v405, %v404
    %v507 = vpack.c.b16 %v407, %v406
    %v508 = vpack.c.b16 %v409, %v408
    %v509 = vpack.c.b16 %v411, %v410
    %v510 = vpack.c.b16 %v413, %v412
    %v511 = vpack.c.b16 %v415, %v414
    %v512 = vpack.c.b16 %v417, %v416
    %v513 = vpack.c.b16 %v419, %v418
    %v514 = vpack.c.b16 %v421, %v420
    %v515 = vpack.c.b16 %v423, %v422
    %v516 = vpack.c.b16 %v425, %v424
    %v517 = vpack.c.b16 %v427, %v426
    %v518 = vpack.c.b16 %v429, %v428
    %v519 = vpack.c.b16 %v431, %v430
    %v520 = vpack.c.b16 %v433, %v432
    %v521 = vpack.c.b16 %v435, %v434
    %v522 = vpack.c.b16 %v437, %v436
    %v523 = vpack.c.b16 %v439, %v438
    %v524 = vpack.c.b16 %v441, %v440
    %v525 = vpack.c.b16 %v443, %v442
    %v526 = vpack.c.b16 %v445, %v444
    %v527 = vpack.c.b16 %v447, %v446
    %v528 = vpack.c.b16 %v449, %v448
    %v529 = vpack.c.b16 %v451, %v450
    %v530 = vpack.c.b16 %v453, %v452
    %v531 = vpack.c.b16 %v455, %v454
    %v532 = vpack.c.b16 %v457, %v456
    %v533 = vpack.c.b16 %v459, %v458
    %v534 = vpack.c.b16 %v461, %v460
    %v535 = vpack.c.b16 %v463, %v462
    %v536 = vpack.c.b16 %v465, %v464
    %v537 = vpack.c.b16 %v467, %v466
    %v538 = vpack.c.b16 %v469, %v468
    %v539 = vpack.c.b16 %v471, %v470
    %v540 = vpack.c.b16 %v473, %v472
    %v541 = vpack.c.b16 %v475, %v474
    %v542 = vpack.c.b16 %v477, %v476
    %v543 = vpack.c.b16 %v479, %v478
    %608 = vmatpush.bf16.msra.mxu0 %v487
    %609 = vmatpush.bf16.msra.mxu0 %v486
    %610 = vmatpush.bf16.msra.mxu0 %v485
    %611 = vmatpush.bf16.msra.mxu0 %v484
    %612 = vmatpush.bf16.msra.mxu0 %v483
    %613 = vmatpush.bf16.msra.mxu0 %v482
    %614 = vmatpush.bf16.msra.mxu0 %v481
    %615 = vmatpush.bf16.msra.mxu0 %v480
    %616 = vmatmul.bf16.gmra.mxu0 %v208
    %v617 = vpop.f32.mrf.mxu0
    %v618 = vadd.f32 %v204, %v617
    %v619 = vpop.f32.mrf.mxu0
    %620 = vdwg.mxu0
    %621 = vmatpush.bf16.msra.mxu0 %v495
    %622 = vmatpush.bf16.msra.mxu0 %v494
    %623 = vmatpush.bf16.msra.mxu0 %v493
    %624 = vmatpush.bf16.msra.mxu0 %v492
    %625 = vmatpush.bf16.msra.mxu0 %v491
    %626 = vmatpush.bf16.msra.mxu0 %v490
    %627 = vmatpush.bf16.msra.mxu0 %v489
    %628 = vmatpush.bf16.msra.mxu0 %v488
    %629 = vmatmul.bf16.gmra.mxu0 %v209
    %v630 = vpop.f32.mrf.mxu0
    %v631 = vadd.f32 %v618, %v630
    %v632 = vpop.f32.mrf.mxu0
    %633 = vdwg.mxu0
    %634 = vmatpush.bf16.msra.mxu0 %v503
    %635 = vmatpush.bf16.msra.mxu0 %v502
    %636 = vmatpush.bf16.msra.mxu0 %v501
    %637 = vmatpush.bf16.msra.mxu0 %v500
    %638 = vmatpush.bf16.msra.mxu0 %v499
    %639 = vmatpush.bf16.msra.mxu0 %v498
    %640 = vmatpush.bf16.msra.mxu0 %v497
    %641 = vmatpush.bf16.msra.mxu0 %v496
    %642 = vmatmul.bf16.gmra.mxu0 %v210
    %v643 = vpop.f32.mrf.mxu0
    %v644 = vadd.f32 %v631, %v643
    %v645 = vpop.f32.mrf.mxu0
    %646 = vdwg.mxu0
    %647 = vmatpush.bf16.msra.mxu0 %v511
    %648 = vmatpush.bf16.msra.mxu0 %v510
    %649 = vmatpush.bf16.msra.mxu0 %v509
    %650 = vmatpush.bf16.msra.mxu0 %v508
    %651 = vmatpush.bf16.msra.mxu0 %v507
    %652 = vmatpush.bf16.msra.mxu0 %v506
    %653 = vmatpush.bf16.msra.mxu0 %v505
    %654 = vmatpush.bf16.msra.mxu0 %v504
    %655 = vmatmul.bf16.gmra.mxu0 %v211
    %v656 = vpop.f32.mrf.mxu0
    %v657 = vadd.f32 %v644, %v656
    %v658 = vpop.f32.mrf.mxu0
    %659 = vdwg.mxu0
    %660 = vmatpush.bf16.msra.mxu0 %v519
    %661 = vmatpush.bf16.msra.mxu0 %v518
    %662 = vmatpush.bf16.msra.mxu0 %v517
    %663 = vmatpush.bf16.msra.mxu0 %v516
    %664 = vmatpush.bf16.msra.mxu0 %v515
    %665 = vmatpush.bf16.msra.mxu0 %v514
    %666 = vmatpush.bf16.msra.mxu0 %v513
    %667 = vmatpush.bf16.msra.mxu0 %v512
    %668 = vmatmul.bf16.gmra.mxu0 %v212
    %v669 = vpop.f32.mrf.mxu0
    %v670 = vadd.f32 %v657, %v669
    %v671 = vpop.f32.mrf.mxu0
    %672 = vdwg.mxu0
    %673 = vmatpush.bf16.msra.mxu0 %v527
    %674 = vmatpush.bf16.msra.mxu0 %v526
    %675 = vmatpush.bf16.msra.mxu0 %v525
    %676 = vmatpush.bf16.msra.mxu0 %v524
    %677 = vmatpush.bf16.msra.mxu0 %v523
    %678 = vmatpush.bf16.msra.mxu0 %v522
    %679 = vmatpush.bf16.msra.mxu0 %v521
    %680 = vmatpush.bf16.msra.mxu0 %v520
    %681 = vmatmul.bf16.gmra.mxu0 %v213
    %v682 = vpop.f32.mrf.mxu0
    %v683 = vadd.f32 %v670, %v682
    %v684 = vpop.f32.mrf.mxu0
    %685 = vdwg.mxu0
    %686 = vmatpush.bf16.msra.mxu0 %v535
    %687 = vmatpush.bf16.msra.mxu0 %v534
    %688 = vmatpush.bf16.msra.mxu0 %v533
    %689 = vmatpush.bf16.msra.mxu0 %v532
    %690 = vmatpush.bf16.msra.mxu0 %v531
    %691 = vmatpush.bf16.msra.mxu0 %v530
    %692 = vmatpush.bf16.msra.mxu0 %v529
    %693 = vmatpush.bf16.msra.mxu0 %v528
    %694 = vmatmul.bf16.gmra.mxu0 %v214
    %v695 = vpop.f32.mrf.mxu0
    %v696 = vadd.f32 %v683, %v695
    %v697 = vpop.f32.mrf.mxu0
    %698 = vdwg.mxu0
    %699 = vmatpush.bf16.msra.mxu0 %v543
    %700 = vmatpush.bf16.msra.mxu0 %v542
    %701 = vmatpush.bf16.msra.mxu0 %v541
    %702 = vmatpush.bf16.msra.mxu0 %v540
    %703 = vmatpush.bf16.msra.mxu0 %v539
    %704 = vmatpush.bf16.msra.mxu0 %v538
    %705 = vmatpush.bf16.msra.mxu0 %v537
    %706 = vmatpush.bf16.msra.mxu0 %v536
    %707 = vmatmul.bf16.gmra.mxu0 %v215
    %v708 = vpop.f32.mrf.mxu0
    %v709 = vadd.f32 %v696, %v708
    %v710 = vpop.f32.mrf.mxu0
    %711 = vdwg.mxu0
    %vm712 = vcmp.gt.f32.partialorder %v709, 0.0
    %v713 = vmul.f32 %v709, 0.2
    %v714 = vsel %vm712, %v709, %v713
    %v715 = vpack.c.bf16 %v714, %v714
    %v716 = vld [vmem:[#allocation4] sm:$0xff]
    %v717 = vld [vmem:[#allocation4 + $0x8] sm:$0xff]
    %v718 = vld [vmem:[#allocation4 + $0x10] sm:$0xff]
    %v719 = vld [vmem:[#allocation4 + $0x18] sm:$0xff]
    %v720 = vld [vmem:[#allocation4 + $0x20] sm:$0xff]
    %v721 = vld [vmem:[#allocation4 + $0x28] sm:$0xff]
    %v722 = vld [vmem:[#allocation4 + $0x30] sm:$0xff]
    %v723 = vld [vmem:[#allocation4 + $0x38] sm:$0xff]
    %v724 = vld [vmem:[#allocation4 + $0x40] sm:$0xff]
    %v725 = vld [vmem:[#allocation4 + $0x48] sm:$0xff]
    %v726 = vld [vmem:[#allocation4 + $0x50] sm:$0xff]
    %v727 = vld [vmem:[#allocation4 + $0x58] sm:$0xff]
    %v728 = vld [vmem:[#allocation4 + $0x60] sm:$0xff]
    %v729 = vld [vmem:[#allocation4 + $0x68] sm:$0xff]
    %v730 = vld [vmem:[#allocation4 + $0x70] sm:$0xff]
    %v731 = vld [vmem:[#allocation4 + $0x78] sm:$0xff]
    %v732 = vld [vmem:[%s4] sm:$0x3]
    %v734 = vperm.slane %v732, 0
    %v735 = vperm.slane %v732, 1
    %v754 = vunpack.c.l.b16 %v716
    %v755 = vunpack.c.h.b16 %v716
    %v756 = vunpack.c.l.b16 %v717
    %v757 = vunpack.c.h.b16 %v717
    %v758 = vunpack.c.l.b16 %v718
    %v759 = vunpack.c.h.b16 %v718
    %v760 = vunpack.c.l.b16 %v719
    %v761 = vunpack.c.h.b16 %v719
    %v762 = vunpack.c.l.b16 %v720
    %v763 = vunpack.c.h.b16 %v720
    %v764 = vunpack.c.l.b16 %v721
    %v765 = vunpack.c.h.b16 %v721
    %v766 = vunpack.c.l.b16 %v722
    %v767 = vunpack.c.h.b16 %v722
    %v768 = vunpack.c.l.b16 %v723
    %v769 = vunpack.c.h.b16 %v723
    %v770 = vunpack.c.l.b16 %v724
    %v771 = vunpack.c.h.b16 %v724
    %v772 = vunpack.c.l.b16 %v725
    %v773 = vunpack.c.h.b16 %v725
    %v774 = vunpack.c.l.b16 %v726
    %v775 = vunpack.c.h.b16 %v726
    %v776 = vunpack.c.l.b16 %v727
    %v777 = vunpack.c.h.b16 %v727
    %v778 = vunpack.c.l.b16 %v728
    %v779 = vunpack.c.h.b16 %v728
    %v780 = vunpack.c.l.b16 %v729
    %v781 = vunpack.c.h.b16 %v729
    %v782 = vunpack.c.l.b16 %v730
    %v783 = vunpack.c.h.b16 %v730
    %v784 = vunpack.c.l.b16 %v731
    %v785 = vunpack.c.h.b16 %v731
    %v786 = vpack.c.b16 %v756, %v754
    %v787 = vpack.c.b16 %v757, %v755
    %v788 = vpack.c.b16 %v760, %v758
    %v789 = vpack.c.b16 %v761, %v759
    %v790 = vpack.c.b16 %v764, %v762
    %v791 = vpack.c.b16 %v765, %v763
    %v792 = vpack.c.b16 %v768, %v766
    %v793 = vpack.c.b16 %v769, %v767
    %v794 = vpack.c.b16 %v772, %v770
    %v795 = vpack.c.b16 %v773, %v771
    %v796 = vpack.c.b16 %v776, %v774
    %v797 = vpack.c.b16 %v777, %v775
    %v798 = vpack.c.b16 %v780, %v778
    %v799 = vpack.c.b16 %v781, %v779
    %v800 = vpack.c.b16 %v784, %v782
    %v801 = vpack.c.b16 %v785, %v783
    %818 = vmatpush.bf16.msra.mxu0 %v800
    %819 = vmatpush.bf16.msra.mxu0 %v798
    %820 = vmatpush.bf16.msra.mxu0 %v796
    %821 = vmatpush.bf16.msra.mxu0 %v794
    %822 = vmatpush.bf16.msra.mxu0 %v792
    %823 = vmatpush.bf16.msra.mxu0 %v790
    %824 = vmatpush.bf16.msra.mxu0 %v788
    %825 = vmatpush.bf16.msra.mxu0 %v786
    %826 = vmatmul.bf16.gmra.mxu0 %v715
    %v827 = vpop.f32.mrf.mxu0
    %v828 = vadd.f32 %v734, %v827
    %v829 = vpop.f32.mrf.mxu0
    %830 = vdwg.mxu0
    %831 = vmatpush.bf16.msra.mxu0 %v801
    %832 = vmatpush.bf16.msra.mxu0 %v799
    %833 = vmatpush.bf16.msra.mxu0 %v797
    %834 = vmatpush.bf16.msra.mxu0 %v795
    %835 = vmatpush.bf16.msra.mxu0 %v793
    %836 = vmatpush.bf16.msra.mxu0 %v791
    %837 = vmatpush.bf16.msra.mxu0 %v789
    %838 = vmatpush.bf16.msra.mxu0 %v787
    %839 = vmatmul.bf16.gmra.mxu0 %v715
    %v840 = vpop.f32.mrf.mxu0
    %v841 = vadd.f32 %v735, %v840
    %v842 = vpop.f32.mrf.mxu0
    %843 = vdwg.mxu0
    %vm844 = vcmp.gt.f32.partialorder %v828, 0.0
    %vm845 = vcmp.gt.f32.partialorder %v841, 0.0
    %v846 = vmul.f32 %v828, 0.2
    %v847 = vmul.f32 %v841, 0.2
    %v848 = vsel %vm844, %v828, %v846
    %v849 = vsel %vm845, %v841, %v847
    %v850 = vpack.c.bf16 %v848, %v848
    %v851 = vpack.c.bf16 %v849, %v849
    %v852 = vld [vmem:[#allocation6] sm:$0xff]
    %v853 = vld [vmem:[#allocation6 + $0x8] sm:$0xf]
    %v854 = vld [vmem:[#allocation6 + $0xc] sm:$0xff]
    %v855 = vld [vmem:[#allocation6 + $0x14] sm:$0xf]
    %v856 = vld [vmem:[#allocation6 + $0x18] sm:$0xff]
    %v857 = vld [vmem:[#allocation6 + $0x20] sm:$0xf]
    %v858 = vld [vmem:[#allocation6 + $0x24] sm:$0xff]
    %v859 = vld [vmem:[#allocation6 + $0x2c] sm:$0xf]
    %v860 = vld [vmem:[#allocation6 + $0x30] sm:$0xff]
    %v861 = vld [vmem:[#allocation6 + $0x38] sm:$0xf]
    %v862 = vld [vmem:[#allocation6 + $0x3c] sm:$0xff]
    %v863 = vld [vmem:[#allocation6 + $0x44] sm:$0xf]
    %v864 = vld [vmem:[#allocation6 + $0x48] sm:$0xff]
    %v865 = vld [vmem:[#allocation6 + $0x50] sm:$0xf]
    %v866 = vld [vmem:[#allocation6 + $0x54] sm:$0xff]
    %v867 = vld [vmem:[#allocation6 + $0x5c] sm:$0xf]
    %v868 = vld [vmem:[#allocation6 + $0x60] sm:$0xff]
    %v869 = vld [vmem:[#allocation6 + $0x68] sm:$0xf]
    %v870 = vld [vmem:[#allocation6 + $0x6c] sm:$0xff]
    %v871 = vld [vmem:[#allocation6 + $0x74] sm:$0xf]
    %v872 = vld [vmem:[#allocation6 + $0x78] sm:$0xff]
    %v873 = vld [vmem:[#allocation6 + $0x80] sm:$0xf]
    %v874 = vld [vmem:[#allocation6 + $0x84] sm:$0xff]
    %v875 = vld [vmem:[#allocation6 + $0x8c] sm:$0xf]
    %v876 = vld [vmem:[#allocation6 + $0x90] sm:$0xff]
    %v877 = vld [vmem:[#allocation6 + $0x98] sm:$0xf]
    %v878 = vld [vmem:[#allocation6 + $0x9c] sm:$0xff]
    %v879 = vld [vmem:[#allocation6 + $0xa4] sm:$0xf]
    %v880 = vld [vmem:[#allocation6 + $0xa8] sm:$0xff]
    %v881 = vld [vmem:[#allocation6 + $0xb0] sm:$0xf]
    %v882 = vld [vmem:[#allocation6 + $0xb4] sm:$0xff]
    %v883 = vld [vmem:[#allocation6 + $0xbc] sm:$0xf]
    %v884 = vld [vmem:[#allocation6 + $0xc0] sm:$0xff]
    %v885 = vld [vmem:[#allocation6 + $0xc8] sm:$0xf]
    %v886 = vld [vmem:[#allocation6 + $0xcc] sm:$0xff]
    %v887 = vld [vmem:[#allocation6 + $0xd4] sm:$0xf]
    %v888 = vld [vmem:[#allocation6 + $0xd8] sm:$0xff]
    %v889 = vld [vmem:[#allocation6 + $0xe0] sm:$0xf]
    %v890 = vld [vmem:[#allocation6 + $0xe4] sm:$0xff]
    %v891 = vld [vmem:[#allocation6 + $0xec] sm:$0xf]
    %v892 = vld [vmem:[#allocation6 + $0xf0] sm:$0xff]
    %v893 = vld [vmem:[#allocation6 + $0xf8] sm:$0xf]
    %v894 = vld [vmem:[#allocation6 + $0xfc] sm:$0xff]
    %v895 = vld [vmem:[#allocation6 + $0x104] sm:$0xf]
    %v896 = vld [vmem:[#allocation6 + $0x108] sm:$0xff]
    %v897 = vld [vmem:[#allocation6 + $0x110] sm:$0xf]
    %v898 = vld [vmem:[#allocation6 + $0x114] sm:$0xff]
    %v899 = vld [vmem:[#allocation6 + $0x11c] sm:$0xf]
    %v900 = vld [vmem:[#allocation6 + $0x120] sm:$0xff]
    %v901 = vld [vmem:[#allocation6 + $0x128] sm:$0xf]
    %v902 = vld [vmem:[#allocation6 + $0x12c] sm:$0xff]
    %v903 = vld [vmem:[#allocation6 + $0x134] sm:$0xf]
    %v904 = vld [vmem:[#allocation6 + $0x138] sm:$0xff]
    %v905 = vld [vmem:[#allocation6 + $0x140] sm:$0xf]
    %v906 = vld [vmem:[#allocation6 + $0x144] sm:$0xff]
    %v907 = vld [vmem:[#allocation6 + $0x14c] sm:$0xf]
    %v908 = vld [vmem:[#allocation6 + $0x150] sm:$0xff]
    %v909 = vld [vmem:[#allocation6 + $0x158] sm:$0xf]
    %v910 = vld [vmem:[#allocation6 + $0x15c] sm:$0xff]
    %v911 = vld [vmem:[#allocation6 + $0x164] sm:$0xf]
    %v912 = vld [vmem:[#allocation6 + $0x168] sm:$0xff]
    %v913 = vld [vmem:[#allocation6 + $0x170] sm:$0xf]
    %v914 = vld [vmem:[#allocation6 + $0x174] sm:$0xff]
    %v915 = vld [vmem:[#allocation6 + $0x17c] sm:$0xf]
    %v916 = vld [vmem:[%s6] sm:$0x7]
    %v918 = vperm.slane %v916, 0
    %v919 = vperm.slane %v916, 1
    %v920 = vperm.slane %v916, 2
    %v988 = vunpack.c.l.b16 %v852
    %v989 = vunpack.c.h.b16 %v852
    %v990 = vunpack.c.l.b16 %v853
    %v991 = vunpack.c.l.b16 %v854
    %v992 = vunpack.c.h.b16 %v854
    %v993 = vunpack.c.l.b16 %v855
    %v994 = vunpack.c.l.b16 %v856
    %v995 = vunpack.c.h.b16 %v856
    %v996 = vunpack.c.l.b16 %v857
    %v997 = vunpack.c.l.b16 %v858
    %v998 = vunpack.c.h.b16 %v858
    %v999 = vunpack.c.l.b16 %v859
    %v1000 = vunpack.c.l.b16 %v860
    %v1001 = vunpack.c.h.b16 %v860
    %v1002 = vunpack.c.l.b16 %v861
    %v1003 = vunpack.c.l.b16 %v862
    %v1004 = vunpack.c.h.b16 %v862
    %v1005 = vunpack.c.l.b16 %v863
    %v1006 = vunpack.c.l.b16 %v864
    %v1007 = vunpack.c.h.b16 %v864
    %v1008 = vunpack.c.l.b16 %v865
    %v1009 = vunpack.c.l.b16 %v866
    %v1010 = vunpack.c.h.b16 %v866
    %v1011 = vunpack.c.l.b16 %v867
    %v1012 = vunpack.c.l.b16 %v868
    %v1013 = vunpack.c.h.b16 %v868
    %v1014 = vunpack.c.l.b16 %v869
    %v1015 = vunpack.c.l.b16 %v870
    %v1016 = vunpack.c.h.b16 %v870
    %v1017 = vunpack.c.l.b16 %v871
    %v1018 = vunpack.c.l.b16 %v872
    %v1019 = vunpack.c.h.b16 %v872
    %v1020 = vunpack.c.l.b16 %v873
    %v1021 = vunpack.c.l.b16 %v874
    %v1022 = vunpack.c.h.b16 %v874
    %v1023 = vunpack.c.l.b16 %v875
    %v1024 = vunpack.c.l.b16 %v876
    %v1025 = vunpack.c.h.b16 %v876
    %v1026 = vunpack.c.l.b16 %v877
    %v1027 = vunpack.c.l.b16 %v878
    %v1028 = vunpack.c.h.b16 %v878
    %v1029 = vunpack.c.l.b16 %v879
    %v1030 = vunpack.c.l.b16 %v880
    %v1031 = vunpack.c.h.b16 %v880
    %v1032 = vunpack.c.l.b16 %v881
    %v1033 = vunpack.c.l.b16 %v882
    %v1034 = vunpack.c.h.b16 %v882
    %v1035 = vunpack.c.l.b16 %v883
    %v1036 = vunpack.c.l.b16 %v884
    %v1037 = vunpack.c.h.b16 %v884
    %v1038 = vunpack.c.l.b16 %v885
    %v1039 = vunpack.c.l.b16 %v886
    %v1040 = vunpack.c.h.b16 %v886
    %v1041 = vunpack.c.l.b16 %v887
    %v1042 = vunpack.c.l.b16 %v888
    %v1043 = vunpack.c.h.b16 %v888
    %v1044 = vunpack.c.l.b16 %v889
    %v1045 = vunpack.c.l.b16 %v890
    %v1046 = vunpack.c.h.b16 %v890
    %v1047 = vunpack.c.l.b16 %v891
    %v1048 = vunpack.c.l.b16 %v892
    %v1049 = vunpack.c.h.b16 %v892
    %v1050 = vunpack.c.l.b16 %v893
    %v1051 = vunpack.c.l.b16 %v894
    %v1052 = vunpack.c.h.b16 %v894
    %v1053 = vunpack.c.l.b16 %v895
    %v1054 = vunpack.c.l.b16 %v896
    %v1055 = vunpack.c.h.b16 %v896
    %v1056 = vunpack.c.l.b16 %v897
    %v1057 = vunpack.c.l.b16 %v898
    %v1058 = vunpack.c.h.b16 %v898
    %v1059 = vunpack.c.l.b16 %v899
    %v1060 = vunpack.c.l.b16 %v900
    %v1061 = vunpack.c.h.b16 %v900
    %v1062 = vunpack.c.l.b16 %v901
    %v1063 = vunpack.c.l.b16 %v902
    %v1064 = vunpack.c.h.b16 %v902
    %v1065 = vunpack.c.l.b16 %v903
    %v1066 = vunpack.c.l.b16 %v904
    %v1067 = vunpack.c.h.b16 %v904
    %v1068 = vunpack.c.l.b16 %v905
    %v1069 = vunpack.c.l.b16 %v906
    %v1070 = vunpack.c.h.b16 %v906
    %v1071 = vunpack.c.l.b16 %v907
    %v1072 = vunpack.c.l.b16 %v908
    %v1073 = vunpack.c.h.b16 %v908
    %v1074 = vunpack.c.l.b16 %v909
    %v1075 = vunpack.c.l.b16 %v910
    %v1076 = vunpack.c.h.b16 %v910
    %v1077 = vunpack.c.l.b16 %v911
    %v1078 = vunpack.c.l.b16 %v912
    %v1079 = vunpack.c.h.b16 %v912
    %v1080 = vunpack.c.l.b16 %v913
    %v1081 = vunpack.c.l.b16 %v914
    %v1082 = vunpack.c.h.b16 %v914
    %v1083 = vunpack.c.l.b16 %v915
    %v1084 = vpack.c.b16 %v991, %v988
    %v1085 = vpack.c.b16 %v992, %v989
    %v1086 = vpack.c.b16 %v993, %v990
    %v1087 = vpack.c.b16 %v997, %v994
    %v1088 = vpack.c.b16 %v998, %v995
    %v1089 = vpack.c.b16 %v999, %v996
    %v1090 = vpack.c.b16 %v1003, %v1000
    %v1091 = vpack.c.b16 %v1004, %v1001
    %v1092 = vpack.c.b16 %v1005, %v1002
    %v1093 = vpack.c.b16 %v1009, %v1006
    %v1094 = vpack.c.b16 %v1010, %v1007
    %v1095 = vpack.c.b16 %v1011, %v1008
    %v1096 = vpack.c.b16 %v1015, %v1012
    %v1097 = vpack.c.b16 %v1016, %v1013
    %v1098 = vpack.c.b16 %v1017, %v1014
    %v1099 = vpack.c.b16 %v1021, %v1018
    %v1100 = vpack.c.b16 %v1022, %v1019
    %v1101 = vpack.c.b16 %v1023, %v1020
    %v1102 = vpack.c.b16 %v1027, %v1024
    %v1103 = vpack.c.b16 %v1028, %v1025
    %v1104 = vpack.c.b16 %v1029, %v1026
    %v1105 = vpack.c.b16 %v1033, %v1030
    %v1106 = vpack.c.b16 %v1034, %v1031
    %v1107 = vpack.c.b16 %v1035, %v1032
    %v1108 = vpack.c.b16 %v1039, %v1036
    %v1109 = vpack.c.b16 %v1040, %v1037
    %v1110 = vpack.c.b16 %v1041, %v1038
    %v1111 = vpack.c.b16 %v1045, %v1042
    %v1112 = vpack.c.b16 %v1046, %v1043
    %v1113 = vpack.c.b16 %v1047, %v1044
    %v1114 = vpack.c.b16 %v1051, %v1048
    %v1115 = vpack.c.b16 %v1052, %v1049
    %v1116 = vpack.c.b16 %v1053, %v1050
    %v1117 = vpack.c.b16 %v1057, %v1054
    %v1118 = vpack.c.b16 %v1058, %v1055
    %v1119 = vpack.c.b16 %v1059, %v1056
    %v1120 = vpack.c.b16 %v1063, %v1060
    %v1121 = vpack.c.b16 %v1064, %v1061
    %v1122 = vpack.c.b16 %v1065, %v1062
    %v1123 = vpack.c.b16 %v1069, %v1066
    %v1124 = vpack.c.b16 %v1070, %v1067
    %v1125 = vpack.c.b16 %v1071, %v1068
    %v1126 = vpack.c.b16 %v1075, %v1072
    %v1127 = vpack.c.b16 %v1076, %v1073
    %v1128 = vpack.c.b16 %v1077, %v1074
    %v1129 = vpack.c.b16 %v1081, %v1078
    %v1130 = vpack.c.b16 %v1082, %v1079
    %v1131 = vpack.c.b16 %v1083, %v1080
    %1180 = vmatpush.bf16.msra.mxu0 %v1105
    %1181 = vmatpush.bf16.msra.mxu0 %v1102
    %1182 = vmatpush.bf16.msra.mxu0 %v1099
    %1183 = vmatpush.bf16.msra.mxu0 %v1096
    %1184 = vmatpush.bf16.msra.mxu0 %v1093
    %1185 = vmatpush.bf16.msra.mxu0 %v1090
    %1186 = vmatpush.bf16.msra.mxu0 %v1087
    %1187 = vmatpush.bf16.msra.mxu0 %v1084
    %1188 = vmatmul.bf16.gmra.mxu0 %v850
    %v1189 = vpop.f32.mrf.mxu0
    %v1190 = vadd.f32 %v918, %v1189
    %v1191 = vpop.f32.mrf.mxu0
    %1192 = vdwg.mxu0
    %1193 = vmatpush.bf16.msra.mxu0 %v1129
    %1194 = vmatpush.bf16.msra.mxu0 %v1126
    %1195 = vmatpush.bf16.msra.mxu0 %v1123
    %1196 = vmatpush.bf16.msra.mxu0 %v1120
    %1197 = vmatpush.bf16.msra.mxu0 %v1117
    %1198 = vmatpush.bf16.msra.mxu0 %v1114
    %1199 = vmatpush.bf16.msra.mxu0 %v1111
    %1200 = vmatpush.bf16.msra.mxu0 %v1108
    %1201 = vmatmul.bf16.gmra.mxu0 %v851
    %v1202 = vpop.f32.mrf.mxu0
    %v1203 = vadd.f32 %v1190, %v1202
    %v1204 = vpop.f32.mrf.mxu0
    %1205 = vdwg.mxu0
    %1206 = vmatpush.bf16.msra.mxu0 %v1106
    %1207 = vmatpush.bf16.msra.mxu0 %v1103
    %1208 = vmatpush.bf16.msra.mxu0 %v1100
    %1209 = vmatpush.bf16.msra.mxu0 %v1097
    %1210 = vmatpush.bf16.msra.mxu0 %v1094
    %1211 = vmatpush.bf16.msra.mxu0 %v1091
    %1212 = vmatpush.bf16.msra.mxu0 %v1088
    %1213 = vmatpush.bf16.msra.mxu0 %v1085
    %1214 = vmatmul.bf16.gmra.mxu0 %v850
    %v1215 = vpop.f32.mrf.mxu0
    %v1216 = vadd.f32 %v919, %v1215
    %v1217 = vpop.f32.mrf.mxu0
    %1218 = vdwg.mxu0
    %1219 = vmatpush.bf16.msra.mxu0 %v1130
    %1220 = vmatpush.bf16.msra.mxu0 %v1127
    %1221 = vmatpush.bf16.msra.mxu0 %v1124
    %1222 = vmatpush.bf16.msra.mxu0 %v1121
    %1223 = vmatpush.bf16.msra.mxu0 %v1118
    %1224 = vmatpush.bf16.msra.mxu0 %v1115
    %1225 = vmatpush.bf16.msra.mxu0 %v1112
    %1226 = vmatpush.bf16.msra.mxu0 %v1109
    %1227 = vmatmul.bf16.gmra.mxu0 %v851
    %v1228 = vpop.f32.mrf.mxu0
    %v1229 = vadd.f32 %v1216, %v1228
    %v1230 = vpop.f32.mrf.mxu0
    %1231 = vdwg.mxu0
    %1232 = vmatpush.bf16.msra.mxu0 %v1107
    %1233 = vmatpush.bf16.msra.mxu0 %v1104
    %1234 = vmatpush.bf16.msra.mxu0 %v1101
    %1235 = vmatpush.bf16.msra.mxu0 %v1098
    %1236 = vmatpush.bf16.msra.mxu0 %v1095
    %1237 = vmatpush.bf16.msra.mxu0 %v1092
    %1238 = vmatpush.bf16.msra.mxu0 %v1089
    %1239 = vmatpush.bf16.msra.mxu0 %v1086
    %1240 = vmatmul.bf16.gmra.mxu0 %v850
    %v1241 = vpop.f32.mrf.mxu0
    %v1242 = vadd.f32 %v920, %v1241
    %v1243 = vpop.f32.mrf.mxu0
    %1244 = vdwg.mxu0
    %1245 = vmatpush.bf16.msra.mxu0 %v1131
    %1246 = vmatpush.bf16.msra.mxu0 %v1128
    %1247 = vmatpush.bf16.msra.mxu0 %v1125
    %1248 = vmatpush.bf16.msra.mxu0 %v1122
    %1249 = vmatpush.bf16.msra.mxu0 %v1119
    %1250 = vmatpush.bf16.msra.mxu0 %v1116
    %1251 = vmatpush.bf16.msra.mxu0 %v1113
    %1252 = vmatpush.bf16.msra.mxu0 %v1110
    %1253 = vmatmul.bf16.gmra.mxu0 %v851
    %v1254 = vpop.f32.mrf.mxu0
    %v1255 = vadd.f32 %v1242, %v1254
    %v1256 = vpop.f32.mrf.mxu0
    %1257 = vdwg.mxu0
    %v1261 = vrot.slane %v1229, 6
    %v1262 = vrot.slane %v1255, 4
    %vm1263 = vcmask 1041408
    %v1264 = vsel %vm1263, %v1203, %v1261
    %vm1265 = vcmask 1043456
    %v1266 = vsel %vm1265, %v1264, %v1262
    %1268 = vst [vmem:[%s7] sm:$0x3f] %v1266
    // Predicated region
    $region42: #{conv_generator_forward.1} parent=1 // pred_check
      _
    $region43: #{conv_generator_forward.1} parent=1 // pred_check_branch
      %1270 = sbr.rel (0) target = $region45
    $region44: #{conv_generator_forward.1} parent=1 // pred_region
      _
    $region45: #{conv_generator_forward.1} parent=1 // pred_fallthru
      _
    // Predicated region
    $region46: #{conv_generator_forward.1} parent=1 // pred_check
      _
    $region47: #{conv_generator_forward.1} parent=1 // pred_check_branch
      %1272 = sbr.rel (0) target = $region49
    $region48: #{conv_generator_forward.1} parent=1 // pred_region
      _
    $region49: #{conv_generator_forward.1} parent=1 // pred_fallthru
      _
    %1273 = vsyncpa [#allocation3], 1
    %1274 = vsyncpa [#allocation5], 1

</llo_original>
